<compile_context>
chip_gen: v7x
topology: tpu7x:2x2x1
jax: 0.10.0
libtpu: 0.0.40
codegen_flags: <defaults>
</compile_context>

<pallas_src>
import functools

import jax
import jax.numpy as jnp
from jax import lax
from jax.experimental import pallas as pl
from jax.experimental.pallas import tpu as pltpu


def mlp_kernel(x_ref,
               w1_ref, b1_ref,
               w2_ref, b2_ref,
               w3_ref, b3_ref,
               w4_ref, b4_ref,
               o_ref,
               h_a, h_b):
    # Transposed, lane-dense layout: activations are (features, batch) so the batch
    # rides the 128-lane axis. Biases are (features, 1) -> lane-broadcast adds.
    # Layer 1: contract w1 (50, 43) with x (tile_b, 43) on the feature axis -> (50, tile_b).
    h1 = lax.dot_general(w1_ref[...], x_ref[...], (((1,), (1,)), ((), ())),
                         preferred_element_type=jnp.float32)
    h_a[...] = jnp.maximum(h1 + b1_ref[...], 0.0).astype(h_a.dtype)

    # Layer 2: (50, 50) @ (50, tile_b) -> (50, tile_b)
    h2 = jnp.dot(w2_ref[...], h_a[...], preferred_element_type=jnp.float32)
    h_b[...] = jnp.maximum(h2 + b2_ref[...], 0.0).astype(h_b.dtype)

    # Layer 3
    h3 = jnp.dot(w3_ref[...], h_b[...], preferred_element_type=jnp.float32)
    h_a[...] = jnp.maximum(h3 + b3_ref[...], 0.0).astype(h_a.dtype)

    # Layer 4: (1, 50) @ (50, tile_b) -> lane-dense (1, tile_b) output row.
    o_ref[...] = (jnp.dot(w4_ref[...], h_a[...], preferred_element_type=jnp.float32)
                  + b4_ref[...])


def _round_up(n, m):
    return (n + m - 1) // m * m


@functools.partial(jax.jit, static_argnames=("tile_b",))
def _custom_mlp_impl(x, w1, b1, w2, b2, w3, b3, w4, b4, *, tile_b):
    B, d_in = x.shape
    h_dim = w1.shape[0]                      # 50
    num_tiles = pl.cdiv(B, tile_b)           # python int (shapes are static here)
    n_pad = num_tiles * tile_b
    compute_dtype = x.dtype                  # f32, or bf16 on the low-precision path

    # x is tiled along the batch; the last block may read past B (garbage rows only
    # feed output lanes that are sliced away below — never reduced across).
    in_specs = [pl.BlockSpec((tile_b, d_in), lambda i: (i, 0))] + [
        # Full-array blocks with constant index_map -> weights/biases stay resident
        # in VMEM across all batch-grid steps (DMA'd once).
        pl.BlockSpec(p.shape, lambda i: (0, 0))
        for p in (w1, b1, w2, b2, w3, b3, w4, b4)
    ]
    out_specs = pl.BlockSpec((1, tile_b), lambda i: (0, i))

    out = pl.pallas_call(
        mlp_kernel,
        out_shape=jax.ShapeDtypeStruct((1, n_pad), jnp.float32),
        grid=(num_tiles,),
        in_specs=in_specs,
        out_specs=out_specs,
        scratch_shapes=[
            pltpu.VMEM((h_dim, tile_b), compute_dtype),
            pltpu.VMEM((h_dim, tile_b), compute_dtype),
        ],
        compiler_params=pltpu.CompilerParams(dimension_semantics=("parallel",)),
    )(x, w1, b1, w2, b2, w3, b3, w4, b4)

    # Lane-dense (1, n_pad) row -> (B, 1) column, dropping the pad lanes.
    return out[0, :B].reshape(B, 1)


def custom_mlp(x, params, tile_b=4096, use_bf16=False):
    """x: (B, 43) float32. params: output of prepare_params().

    use_bf16: cast x / weights / activations to bf16 (f32 MXU accumulation, f32
    bias+ReLU). Halves the dominant HBM stream on v6e/v7x; relax tolerances vs the
    f32 torch reference. In a real pipeline x would already arrive in bf16.
    """
    B = x.shape[0]
    tb = max(128, min(tile_b, _round_up(max(B, 1), 128)))
    tb = _round_up(tb, 128)  # lane-dense output blocks (multiple of 128)

    compute_dtype = jnp.bfloat16 if use_bf16 else jnp.float32
    xin = x.astype(compute_dtype)
    w = {k: params[k].astype(compute_dtype) for k in ("w1", "w2", "w3", "w4")}

    return _custom_mlp_impl(
        xin,
        w["w1"], params["b1"],
        w["w2"], params["b2"],
        w["w3"], params["b3"],
        w["w4"], params["b4"],
        tile_b=tb,
    )


def prepare_params(torch_params):
    """One-time conversion from torch layout: weights stay (out, in); biases -> (out, 1)."""
    return dict(
        w1=jnp.asarray(torch_params["w1"]),                   # (50, 43)
        b1=jnp.asarray(torch_params["b1"]).reshape(-1, 1),    # (50, 1)
        w2=jnp.asarray(torch_params["w2"]),                   # (50, 50)
        b2=jnp.asarray(torch_params["b2"]).reshape(-1, 1),    # (50, 1)
        w3=jnp.asarray(torch_params["w3"]),                   # (50, 50)
        b3=jnp.asarray(torch_params["b3"]).reshape(-1, 1),    # (50, 1)
        w4=jnp.asarray(torch_params["w4"]),                   # (1, 50)
        b4=jnp.asarray(torch_params["b4"]).reshape(1, 1),     # (1, 1)
    )


def init_params(key):
    """Deterministic init matching nn.Linear default (uniform(+-1/sqrt(fan_in)))."""
    dims = [(50, 43), (50, 50), (50, 50), (1, 50)]
    params = {}
    for i, (out_f, in_f) in enumerate(dims, start=1):
        key, kw, kb = jax.random.split(key, 3)
        bound = 1.0 / (in_f ** 0.5)
        params[f"w{i}"] = jax.random.uniform(kw, (out_f, in_f), jnp.float32, -bound, bound)
        params[f"b{i}"] = jax.random.uniform(kb, (out_f,), jnp.float32, -bound, bound)
    return params


def reference_mlp(x, torch_params, compute_dtype=jnp.float32):
    """Pure-JAX reference mirroring the kernel's precision choices."""
    h = x.astype(compute_dtype)
    for i in (1, 2, 3):
        w = torch_params[f"w{i}"].astype(compute_dtype)
        h = jnp.maximum(
            jnp.dot(h, w.T, preferred_element_type=jnp.float32) + torch_params[f"b{i}"],
            0.0).astype(compute_dtype)
    w4 = torch_params["w4"].astype(compute_dtype)
    return jnp.dot(h, w4.T, preferred_element_type=jnp.float32) + torch_params["b4"]


if __name__ == "__main__":
    key = jax.random.PRNGKey(0)
    key, kx = jax.random.split(key)

    torch_params = init_params(key)
    params = prepare_params(torch_params)

    # Config 1: B not a multiple of the tile -> 2 grid steps, last block reads past B
    # (no jnp.pad; pad lanes are sliced off).
    B1 = 300
    x1 = jax.random.normal(kx, (B1, 43), jnp.float32)
    out1 = jax.block_until_ready(custom_mlp(x1, params, tile_b=256))
    ref1 = reference_mlp(x1, torch_params)
    assert out1.shape == (B1, 1), out1.shape
    assert jnp.allclose(out1, ref1, atol=2e-4, rtol=2e-4), "mismatch vs reference (config 1)"

    # Config 2: default tile (clamped to the batch) -> single grid step, full-tile matmuls.
    B2 = 512
    x2 = jax.random.normal(jax.random.PRNGKey(1), (B2, 43), jnp.float32)
    out2 = jax.block_until_ready(custom_mlp(x2, params))
    ref2 = reference_mlp(x2, torch_params)
    assert out2.shape == (B2, 1), out2.shape
    assert jnp.allclose(out2, ref2, atol=2e-4, rtol=2e-4), "mismatch vs reference (config 2)"

    # Config 3: bf16 compute path (f32 accumulation) — checked against a bf16-mirrored
    # reference at a relaxed tolerance.
    out3 = jax.block_until_ready(custom_mlp(x1, params, tile_b=128, use_bf16=True))
    ref3 = reference_mlp(x1, torch_params, compute_dtype=jnp.bfloat16)
    assert out3.shape == (B1, 1), out3.shape
    assert jnp.allclose(out3, ref3, atol=1e-2, rtol=1e-2), "mismatch vs reference (config 3)"

    print("KERNEL_OK")
</pallas_src>

<mosaic_0001>
module attributes {stable_mosaic.version = 11 : i64} {
  func.func @mlp_kernel(%arg0: i32, %arg1: memref<256x43xf32, #tpu.memory_space<vmem>>, %arg2: memref<50x43xf32, #tpu.memory_space<vmem>>, %arg3: memref<50x1xf32, #tpu.memory_space<vmem>>, %arg4: memref<50x50xf32, #tpu.memory_space<vmem>>, %arg5: memref<50x1xf32, #tpu.memory_space<vmem>>, %arg6: memref<50x50xf32, #tpu.memory_space<vmem>>, %arg7: memref<50x1xf32, #tpu.memory_space<vmem>>, %arg8: memref<1x50xf32, #tpu.memory_space<vmem>>, %arg9: memref<1x1xf32, #tpu.memory_space<vmem>>, %arg10: memref<1x256xf32, #tpu.memory_space<vmem>>, %arg11: memref<50x256xf32, #tpu.memory_space<vmem>>, %arg12: memref<50x256xf32, #tpu.memory_space<vmem>>) attributes {dimension_semantics = [#tpu.dimension_semantics<parallel>], iteration_bounds = array<i64: 2>, scalar_prefetch = 0 : i64, scratch_operands = 2 : i64, tpu.core_type = #tpu.core_type<tc>, window_params = [{transform_indices = @transform_0, window_bounds = array<i64: 256, 43>}, {pipeline_mode = #tpu.pipeline_mode<synchronous>, transform_indices = @transform_1, window_bounds = array<i64: 50, 43>}, {pipeline_mode = #tpu.pipeline_mode<synchronous>, transform_indices = @transform_2, window_bounds = array<i64: 50, 1>}, {pipeline_mode = #tpu.pipeline_mode<synchronous>, transform_indices = @transform_3, window_bounds = array<i64: 50, 50>}, {pipeline_mode = #tpu.pipeline_mode<synchronous>, transform_indices = @transform_4, window_bounds = array<i64: 50, 1>}, {pipeline_mode = #tpu.pipeline_mode<synchronous>, transform_indices = @transform_5, window_bounds = array<i64: 50, 50>}, {pipeline_mode = #tpu.pipeline_mode<synchronous>, transform_indices = @transform_6, window_bounds = array<i64: 50, 1>}, {pipeline_mode = #tpu.pipeline_mode<synchronous>, transform_indices = @transform_7, window_bounds = array<i64: 1, 50>}, {pipeline_mode = #tpu.pipeline_mode<synchronous>, transform_indices = @transform_8, window_bounds = array<i64: 1, 1>}, {transform_indices = @transform_9, window_bounds = array<i64: 1, 256>}]} {
    %c0 = arith.constant 0 : index
    %c0_0 = arith.constant 0 : index
    %0 = vector.load %arg2[%c0, %c0_0] : memref<50x43xf32, #tpu.memory_space<vmem>>, vector<50x43xf32>
    %c0_1 = arith.constant 0 : index
    %c0_2 = arith.constant 0 : index
    %1 = vector.load %arg1[%c0_1, %c0_2] : memref<256x43xf32, #tpu.memory_space<vmem>>, vector<256x43xf32>
    %cst = arith.constant dense<0.000000e+00> : vector<50x256xf32>
    %2 = tpu.matmul %0, %1, %cst {dimension_numbers = #tpu.dot_dimension_numbers<[1], [1], [0], [0], [0, 0, 1, 0], [], []>} : vector<50x43xf32>, vector<256x43xf32>, vector<50x256xf32> -> vector<50x256xf32>
    %c0_3 = arith.constant 0 : index
    %c0_4 = arith.constant 0 : index
    %3 = vector.load %arg3[%c0_3, %c0_4] : memref<50x1xf32, #tpu.memory_space<vmem>>, vector<50x1xf32>
    %4 = vector.broadcast %3 : vector<50x1xf32> to vector<50x256xf32>
    %5 = arith.addf %2, %4 : vector<50x256xf32>
    %cst_5 = arith.constant 0.000000e+00 : f32
    %6 = vector.broadcast %cst_5 : f32 to vector<50x256xf32>
    %7 = arith.maximumf %5, %6 : vector<50x256xf32>
    %c0_6 = arith.constant 0 : index
    %c0_7 = arith.constant 0 : index
    %8 = vector.load %arg11[%c0_6, %c0_7] : memref<50x256xf32, #tpu.memory_space<vmem>>, vector<50x256xf32>
    tpu.vector_store %arg11[%c0_6, %c0_7], %7 {strides = array<i32>} : memref<50x256xf32, #tpu.memory_space<vmem>>, vector<50x256xf32>,
    %c0_8 = arith.constant 0 : index
    %c0_9 = arith.constant 0 : index
    %9 = vector.load %arg4[%c0_8, %c0_9] : memref<50x50xf32, #tpu.memory_space<vmem>>, vector<50x50xf32>
    %c0_10 = arith.constant 0 : index
    %c0_11 = arith.constant 0 : index
    %10 = vector.load %arg11[%c0_10, %c0_11] : memref<50x256xf32, #tpu.memory_space<vmem>>, vector<50x256xf32>
    %cst_12 = arith.constant dense<0.000000e+00> : vector<50x256xf32>
    %11 = tpu.matmul %9, %10, %cst_12 {dimension_numbers = #tpu.dot_dimension_numbers<[1], [0], [0], [1], [0, 0, 1, 1], [], []>} : vector<50x50xf32>, vector<50x256xf32>, vector<50x256xf32> -> vector<50x256xf32>
    %c0_13 = arith.constant 0 : index
    %c0_14 = arith.constant 0 : index
    %12 = vector.load %arg5[%c0_13, %c0_14] : memref<50x1xf32, #tpu.memory_space<vmem>>, vector<50x1xf32>
    %13 = vector.broadcast %12 : vector<50x1xf32> to vector<50x256xf32>
    %14 = arith.addf %11, %13 : vector<50x256xf32>
    %cst_15 = arith.constant 0.000000e+00 : f32
    %15 = vector.broadcast %cst_15 : f32 to vector<50x256xf32>
    %16 = arith.maximumf %14, %15 : vector<50x256xf32>
    %c0_16 = arith.constant 0 : index
    %c0_17 = arith.constant 0 : index
    %17 = vector.load %arg12[%c0_16, %c0_17] : memref<50x256xf32, #tpu.memory_space<vmem>>, vector<50x256xf32>
    tpu.vector_store %arg12[%c0_16, %c0_17], %16 {strides = array<i32>} : memref<50x256xf32, #tpu.memory_space<vmem>>, vector<50x256xf32>,
    %c0_18 = arith.constant 0 : index
    %c0_19 = arith.constant 0 : index
    %18 = vector.load %arg6[%c0_18, %c0_19] : memref<50x50xf32, #tpu.memory_space<vmem>>, vector<50x50xf32>
    %c0_20 = arith.constant 0 : index
    %c0_21 = arith.constant 0 : index
    %19 = vector.load %arg12[%c0_20, %c0_21] : memref<50x256xf32, #tpu.memory_space<vmem>>, vector<50x256xf32>
    %cst_22 = arith.constant dense<0.000000e+00> : vector<50x256xf32>
    %20 = tpu.matmul %18, %19, %cst_22 {dimension_numbers = #tpu.dot_dimension_numbers<[1], [0], [0], [1], [0, 0, 1, 1], [], []>} : vector<50x50xf32>, vector<50x256xf32>, vector<50x256xf32> -> vector<50x256xf32>
    %c0_23 = arith.constant 0 : index
    %c0_24 = arith.constant 0 : index
    %21 = vector.load %arg7[%c0_23, %c0_24] : memref<50x1xf32, #tpu.memory_space<vmem>>, vector<50x1xf32>
    %22 = vector.broadcast %21 : vector<50x1xf32> to vector<50x256xf32>
    %23 = arith.addf %20, %22 : vector<50x256xf32>
    %cst_25 = arith.constant 0.000000e+00 : f32
    %24 = vector.broadcast %cst_25 : f32 to vector<50x256xf32>
    %25 = arith.maximumf %23, %24 : vector<50x256xf32>
    %c0_26 = arith.constant 0 : index
    %c0_27 = arith.constant 0 : index
    %26 = vector.load %arg11[%c0_26, %c0_27] : memref<50x256xf32, #tpu.memory_space<vmem>>, vector<50x256xf32>
    tpu.vector_store %arg11[%c0_26, %c0_27], %25 {strides = array<i32>} : memref<50x256xf32, #tpu.memory_space<vmem>>, vector<50x256xf32>,
    %c0_28 = arith.constant 0 : index
    %c0_29 = arith.constant 0 : index
    %27 = vector.load %arg8[%c0_28, %c0_29] : memref<1x50xf32, #tpu.memory_space<vmem>>, vector<1x50xf32>
    %c0_30 = arith.constant 0 : index
    %c0_31 = arith.constant 0 : index
    %28 = vector.load %arg11[%c0_30, %c0_31] : memref<50x256xf32, #tpu.memory_space<vmem>>, vector<50x256xf32>
    %cst_32 = arith.constant dense<0.000000e+00> : vector<1x256xf32>
    %29 = tpu.matmul %27, %28, %cst_32 {dimension_numbers = #tpu.dot_dimension_numbers<[1], [0], [0], [1], [0, 0, 1, 1], [], []>} : vector<1x50xf32>, vector<50x256xf32>, vector<1x256xf32> -> vector<1x256xf32>
    %c0_33 = arith.constant 0 : index
    %c0_34 = arith.constant 0 : index
    %30 = vector.load %arg9[%c0_33, %c0_34] : memref<1x1xf32, #tpu.memory_space<vmem>>, vector<1x1xf32>
    %31 = vector.broadcast %30 : vector<1x1xf32> to vector<1x256xf32>
    %32 = arith.addf %29, %31 : vector<1x256xf32>
    %c0_35 = arith.constant 0 : index
    %c0_36 = arith.constant 0 : index
    %33 = vector.load %arg10[%c0_35, %c0_36] : memref<1x256xf32, #tpu.memory_space<vmem>>, vector<1x256xf32>
    tpu.vector_store %arg10[%c0_35, %c0_36], %32 {strides = array<i32>} : memref<1x256xf32, #tpu.memory_space<vmem>>, vector<1x256xf32>,
    return
  }
  func.func @transform_0(%arg0: i32) -> (i32, i32) {
    %c0_i32 = arith.constant 0 : i32
    %c0_i32_0 = arith.constant 0 : i32
    return %arg0, %c0_i32 : i32, i32
  }
  func.func @transform_1(%arg0: i32) -> (i32, i32) {
    %c0_i32 = arith.constant 0 : i32
    %c0_i32_0 = arith.constant 0 : i32
    %c0_i32_1 = arith.constant 0 : i32
    return %c0_i32, %c0_i32_0 : i32, i32
  }
  func.func @transform_2(%arg0: i32) -> (i32, i32) {
    %c0_i32 = arith.constant 0 : i32
    %c0_i32_0 = arith.constant 0 : i32
    %c0_i32_1 = arith.constant 0 : i32
    return %c0_i32, %c0_i32_0 : i32, i32
  }
  func.func @transform_3(%arg0: i32) -> (i32, i32) {
    %c0_i32 = arith.constant 0 : i32
    %c0_i32_0 = arith.constant 0 : i32
    %c0_i32_1 = arith.constant 0 : i32
    return %c0_i32, %c0_i32_0 : i32, i32
  }
  func.func @transform_4(%arg0: i32) -> (i32, i32) {
    %c0_i32 = arith.constant 0 : i32
    %c0_i32_0 = arith.constant 0 : i32
    %c0_i32_1 = arith.constant 0 : i32
    return %c0_i32, %c0_i32_0 : i32, i32
  }
  func.func @transform_5(%arg0: i32) -> (i32, i32) {
    %c0_i32 = arith.constant 0 : i32
    %c0_i32_0 = arith.constant 0 : i32
    %c0_i32_1 = arith.constant 0 : i32
    return %c0_i32, %c0_i32_0 : i32, i32
  }
  func.func @transform_6(%arg0: i32) -> (i32, i32) {
    %c0_i32 = arith.constant 0 : i32
    %c0_i32_0 = arith.constant 0 : i32
    %c0_i32_1 = arith.constant 0 : i32
    return %c0_i32, %c0_i32_0 : i32, i32
  }
  func.func @transform_7(%arg0: i32) -> (i32, i32) {
    %c0_i32 = arith.constant 0 : i32
    %c0_i32_0 = arith.constant 0 : i32
    %c0_i32_1 = arith.constant 0 : i32
    return %c0_i32, %c0_i32_0 : i32, i32
  }
  func.func @transform_8(%arg0: i32) -> (i32, i32) {
    %c0_i32 = arith.constant 0 : i32
    %c0_i32_0 = arith.constant 0 : i32
    %c0_i32_1 = arith.constant 0 : i32
    return %c0_i32, %c0_i32_0 : i32, i32
  }
  func.func @transform_9(%arg0: i32) -> (i32, i32) {
    %c0_i32 = arith.constant 0 : i32
    %c0_i32_0 = arith.constant 0 : i32
    return %c0_i32, %arg0 : i32, i32
  }
}

</mosaic_0001>

<llo_original>
// kernel: _custom_mlp_impl.1
$region0: #{_custom_mlp_impl.1}
  #allocation0 [shape = 'u32[]', space=smem, size = 0x4, offset = 0x4, fixed_abs, tag = 'smem constant byte address 0x4 - core index']
  #allocation1 [shape = 'u32[144,128]{1,0:T(1,128)}', space=vmem, size = 0x12000, scoped, tag = 'internal scratch']
  #allocation2 [shape = 'f32[50,256]{1,0:T(8,128)}', space=vmem, size = 0xe000, scoped, tag = 'scratch operand']
  #allocation3 [shape = 'f32[50,256]{1,0:T(8,128)}', space=vmem, size = 0xe000, scoped, tag = 'scratch operand']
  #allocation4 [shape = 'f32[1,1]{1,0:T(1,128)S(1)}', space=vmem, size = 0x200, scoped, tag = 'scoped memory for _custom_mlp_impl.1']
  %s0 = inlined_call_operand.vmem [shape: f32[300,43], index: 0, kind: input, shape index: {}]
  %s1 = inlined_call_operand.vmem [shape: f32[50,43], index: 1, kind: input, shape index: {}]
  %s2 = inlined_call_operand.vmem [shape: f32[50,1], index: 2, kind: input, shape index: {}]
  %s3 = inlined_call_operand.vmem [shape: f32[50,50], index: 3, kind: input, shape index: {}]
  %s4 = inlined_call_operand.vmem [shape: f32[50,1], index: 4, kind: input, shape index: {}]
  %s5 = inlined_call_operand.vmem [shape: f32[50,50], index: 5, kind: input, shape index: {}]
  %s6 = inlined_call_operand.vmem [shape: f32[50,1], index: 6, kind: input, shape index: {}]
  %s7 = inlined_call_operand.vmem [shape: f32[1,50], index: 7, kind: input, shape index: {}]
  %s8 = inlined_call_operand.<no memory space> [shape: f32[1,1], index: 8, kind: input, shape index: {}]
  %s9 = inlined_call_operand.vmem [shape: f32[1,512], index: 9, kind: output, shape index: {}]
  %s10 = sld [smem:[#allocation0]]
  $region69: #{_custom_mlp_impl.1} parent=0
    _
  %s12 = ssub.s32 1, %s10
  %s13 = scalar_select 0, %s12, %s10
  %v14 = vstv %s8
  %15 = vst [vmem:[#allocation4] sm:$0x1] %v14
  loop: start=0, step=1, limit=4
  $region2: #{_custom_mlp_impl.1} parent=0 // loop_pre_header
    _
  $region3: #{_custom_mlp_impl.1} parent=0 // loop_header
    %s17 = sphi 0, %s21
    %p18 = scmp.ge.s32.totalorder %s17, 4
    %s27 = sphi 0, %s29
    %s30 = sphi 0, %s27
    %s31 = sphi 0, %s30
    %s47 = sphi 0, %s31
    %s51 = sphi 0, %s51
    %s53 = sphi 0, %s51
    %s54 = sphi 0, %s53
    %s68 = sphi 0, %s54
    %s72 = sphi 0, %s72
    %s74 = sphi 0, %s72
    %s75 = sphi 0, %s74
    %s89 = sphi 0, %s75
    %s93 = sphi 0, %s93
    %s95 = sphi 0, %s93
    %s96 = sphi 0, %s95
    %s110 = sphi 0, %s96
    %s114 = sphi 0, %s114
    %s116 = sphi 0, %s114
    %s117 = sphi 0, %s116
    %s131 = sphi 0, %s117
    %s135 = sphi 0, %s135
    %s137 = sphi 0, %s135
    %s138 = sphi 0, %s137
    %s152 = sphi 0, %s138
    %s156 = sphi 0, %s156
    %s158 = sphi 0, %s156
    %s159 = sphi 0, %s158
    %s173 = sphi 0, %s159
    %s177 = sphi 0, %s177
    %s179 = sphi 0, %s177
    %s180 = sphi 0, %s179
    %s194 = sphi 0, %s180
    %s198 = sphi 0, %s198
    %s200 = sphi 0, %s198
    %s201 = sphi 0, %s200
    %s215 = sphi 0, %s201
    %s221 = sphi 0, %s223
    %s224 = sphi 0, %s221
    %s225 = sphi 0, %s224
    %s241 = sphi 0, %s225
  $region4: #{_custom_mlp_impl.1} parent=0 // loop_header_branch
    %20 = sbr.rel (%p18) target = $region8
  $region5: #{_custom_mlp_impl.1} parent=0 // loop_body
    %s22 = ssub.s32 %s17, 1
    %s23 = ssub.s32 %s17, 2
    %s24 = sadd.s32 %s17, 1
    %s25 = ssub.s32 %s17, %s24
    %p26 = scmp.eq.s32.totalorder %s25, 0
    %s28 = sadd.s32 %s27, 1
    %s29 = scalar_select %p26, %s27, %s28
    %p32 = pneg %p26
    %p33 = scmp.eq.s32.totalorder %s17, 1
    %p34 = por %p32, %p33
    %p35 = scmp.ne.s32.totalorder %s27, %s30
    %p36 = scmp.eq.s32.totalorder %s17, 0
    %p37 = por %p35, %p36
    %p38 = scmp.ne.s32.totalorder %s27, %s30
    %p39 = scmp.eq.s32.totalorder %s22, 1
    %p40 = por %p38, %p39
    %p41 = scmp.ne.s32.totalorder %s30, %s31
    %p42 = scmp.eq.s32.totalorder %s22, 0
    %p43 = por %p41, %p42
    %p44 = scmp.ne.s32.totalorder %s30, %s31
    %p45 = scmp.eq.s32.totalorder %s23, 1
    %p46 = por %p44, %p45
    %p48 = scmp.ne.s32.totalorder %s31, %s47
    %p49 = scmp.eq.s32.totalorder %s23, 0
    %p50 = por %p48, %p49
    %s52 = sadd.s32 %s51, 1
    %p55 = scmp.eq.s32.totalorder %s17, 1
    %p56 = scmp.ne.s32.totalorder %s51, %s53
    %p57 = scmp.eq.s32.totalorder %s17, 0
    %p58 = por %p56, %p57
    %p59 = scmp.ne.s32.totalorder %s51, %s53
    %p60 = scmp.eq.s32.totalorder %s22, 1
    %p61 = por %p59, %p60
    %p62 = scmp.ne.s32.totalorder %s53, %s54
    %p63 = scmp.eq.s32.totalorder %s22, 0
    %p64 = por %p62, %p63
    %p65 = scmp.ne.s32.totalorder %s53, %s54
    %p66 = scmp.eq.s32.totalorder %s23, 1
    %p67 = por %p65, %p66
    %p69 = scmp.ne.s32.totalorder %s54, %s68
    %p70 = scmp.eq.s32.totalorder %s23, 0
    %p71 = por %p69, %p70
    %s73 = sadd.s32 %s72, 1
    %p76 = scmp.eq.s32.totalorder %s17, 1
    %p77 = scmp.ne.s32.totalorder %s72, %s74
    %p78 = scmp.eq.s32.totalorder %s17, 0
    %p79 = por %p77, %p78
    %p80 = scmp.ne.s32.totalorder %s72, %s74
    %p81 = scmp.eq.s32.totalorder %s22, 1
    %p82 = por %p80, %p81
    %p83 = scmp.ne.s32.totalorder %s74, %s75
    %p84 = scmp.eq.s32.totalorder %s22, 0
    %p85 = por %p83, %p84
    %p86 = scmp.ne.s32.totalorder %s74, %s75
    %p87 = scmp.eq.s32.totalorder %s23, 1
    %p88 = por %p86, %p87
    %p90 = scmp.ne.s32.totalorder %s75, %s89
    %p91 = scmp.eq.s32.totalorder %s23, 0
    %p92 = por %p90, %p91
    %s94 = sadd.s32 %s93, 1
    %p97 = scmp.eq.s32.totalorder %s17, 1
    %p98 = scmp.ne.s32.totalorder %s93, %s95
    %p99 = scmp.eq.s32.totalorder %s17, 0
    %p100 = por %p98, %p99
    %p101 = scmp.ne.s32.totalorder %s93, %s95
    %p102 = scmp.eq.s32.totalorder %s22, 1
    %p103 = por %p101, %p102
    %p104 = scmp.ne.s32.totalorder %s95, %s96
    %p105 = scmp.eq.s32.totalorder %s22, 0
    %p106 = por %p104, %p105
    %p107 = scmp.ne.s32.totalorder %s95, %s96
    %p108 = scmp.eq.s32.totalorder %s23, 1
    %p109 = por %p107, %p108
    %p111 = scmp.ne.s32.totalorder %s96, %s110
    %p112 = scmp.eq.s32.totalorder %s23, 0
    %p113 = por %p111, %p112
    %s115 = sadd.s32 %s114, 1
    %p118 = scmp.eq.s32.totalorder %s17, 1
    %p119 = scmp.ne.s32.totalorder %s114, %s116
    %p120 = scmp.eq.s32.totalorder %s17, 0
    %p121 = por %p119, %p120
    %p122 = scmp.ne.s32.totalorder %s114, %s116
    %p123 = scmp.eq.s32.totalorder %s22, 1
    %p124 = por %p122, %p123
    %p125 = scmp.ne.s32.totalorder %s116, %s117
    %p126 = scmp.eq.s32.totalorder %s22, 0
    %p127 = por %p125, %p126
    %p128 = scmp.ne.s32.totalorder %s116, %s117
    %p129 = scmp.eq.s32.totalorder %s23, 1
    %p130 = por %p128, %p129
    %p132 = scmp.ne.s32.totalorder %s117, %s131
    %p133 = scmp.eq.s32.totalorder %s23, 0
    %p134 = por %p132, %p133
    %s136 = sadd.s32 %s135, 1
    %p139 = scmp.eq.s32.totalorder %s17, 1
    %p140 = scmp.ne.s32.totalorder %s135, %s137
    %p141 = scmp.eq.s32.totalorder %s17, 0
    %p142 = por %p140, %p141
    %p143 = scmp.ne.s32.totalorder %s135, %s137
    %p144 = scmp.eq.s32.totalorder %s22, 1
    %p145 = por %p143, %p144
    %p146 = scmp.ne.s32.totalorder %s137, %s138
    %p147 = scmp.eq.s32.totalorder %s22, 0
    %p148 = por %p146, %p147
    %p149 = scmp.ne.s32.totalorder %s137, %s138
    %p150 = scmp.eq.s32.totalorder %s23, 1
    %p151 = por %p149, %p150
    %p153 = scmp.ne.s32.totalorder %s138, %s152
    %p154 = scmp.eq.s32.totalorder %s23, 0
    %p155 = por %p153, %p154
    %s157 = sadd.s32 %s156, 1
    %p160 = scmp.eq.s32.totalorder %s17, 1
    %p161 = scmp.ne.s32.totalorder %s156, %s158
    %p162 = scmp.eq.s32.totalorder %s17, 0
    %p163 = por %p161, %p162
    %p164 = scmp.ne.s32.totalorder %s156, %s158
    %p165 = scmp.eq.s32.totalorder %s22, 1
    %p166 = por %p164, %p165
    %p167 = scmp.ne.s32.totalorder %s158, %s159
    %p168 = scmp.eq.s32.totalorder %s22, 0
    %p169 = por %p167, %p168
    %p170 = scmp.ne.s32.totalorder %s158, %s159
    %p171 = scmp.eq.s32.totalorder %s23, 1
    %p172 = por %p170, %p171
    %p174 = scmp.ne.s32.totalorder %s159, %s173
    %p175 = scmp.eq.s32.totalorder %s23, 0
    %p176 = por %p174, %p175
    %s178 = sadd.s32 %s177, 1
    %p181 = scmp.eq.s32.totalorder %s17, 1
    %p182 = scmp.ne.s32.totalorder %s177, %s179
    %p183 = scmp.eq.s32.totalorder %s17, 0
    %p184 = por %p182, %p183
    %p185 = scmp.ne.s32.totalorder %s177, %s179
    %p186 = scmp.eq.s32.totalorder %s22, 1
    %p187 = por %p185, %p186
    %p188 = scmp.ne.s32.totalorder %s179, %s180
    %p189 = scmp.eq.s32.totalorder %s22, 0
    %p190 = por %p188, %p189
    %p191 = scmp.ne.s32.totalorder %s179, %s180
    %p192 = scmp.eq.s32.totalorder %s23, 1
    %p193 = por %p191, %p192
    %p195 = scmp.ne.s32.totalorder %s180, %s194
    %p196 = scmp.eq.s32.totalorder %s23, 0
    %p197 = por %p195, %p196
    %s199 = sadd.s32 %s198, 1
    %p202 = scmp.eq.s32.totalorder %s17, 1
    %p203 = scmp.ne.s32.totalorder %s198, %s200
    %p204 = scmp.eq.s32.totalorder %s17, 0
    %p205 = por %p203, %p204
    %p206 = scmp.ne.s32.totalorder %s198, %s200
    %p207 = scmp.eq.s32.totalorder %s22, 1
    %p208 = por %p206, %p207
    %p209 = scmp.ne.s32.totalorder %s200, %s201
    %p210 = scmp.eq.s32.totalorder %s22, 0
    %p211 = por %p209, %p210
    %p212 = scmp.ne.s32.totalorder %s200, %s201
    %p213 = scmp.eq.s32.totalorder %s23, 1
    %p214 = por %p212, %p213
    %p216 = scmp.ne.s32.totalorder %s201, %s215
    %p217 = scmp.eq.s32.totalorder %s23, 0
    %p218 = por %p216, %p217
    %s219 = ssub.s32 %s17, %s24
    %p220 = scmp.eq.s32.totalorder %s219, 0
    %s222 = sadd.s32 %s221, 1
    %s223 = scalar_select %p220, %s221, %s222
    %p226 = pneg %p220
    %p227 = scmp.eq.s32.totalorder %s17, 1
    %p228 = por %p226, %p227
    %p229 = scmp.ne.s32.totalorder %s221, %s224
    %p230 = scmp.eq.s32.totalorder %s17, 0
    %p231 = por %p229, %p230
    %p232 = scmp.ne.s32.totalorder %s221, %s224
    %p233 = scmp.eq.s32.totalorder %s22, 1
    %p234 = por %p232, %p233
    %p235 = scmp.ne.s32.totalorder %s224, %s225
    %p236 = scmp.eq.s32.totalorder %s22, 0
    %p237 = por %p235, %p236
    %p238 = scmp.ne.s32.totalorder %s224, %s225
    %p239 = scmp.eq.s32.totalorder %s23, 1
    %p240 = por %p238, %p239
    %p242 = scmp.ne.s32.totalorder %s225, %s241
    %p243 = scmp.eq.s32.totalorder %s23, 0
    %p244 = por %p242, %p243
    %p245 = scmp.le.s32.totalorder 1, %s17
    %p246 = scmp.lt.s32.totalorder %s17, 3
    %p247 = pnand %p245, %p246
    %p248 = pneg %p247
    // Predicated region
    $region9: #{_custom_mlp_impl.1} parent=5 // pred_check
      _
    $region10: #{_custom_mlp_impl.1} parent=5 // pred_check_branch
      %250 = sbr.rel (%p247) target = $region12
    $region11: #{_custom_mlp_impl.1} parent=5 // pred_region
      %s251 = ssub.s32 %s17, 1
      // Predicated region
      $region13: #{_custom_mlp_impl.1} parent=11 // pred_check
        %p252 = pneg %p64
      $region14: #{_custom_mlp_impl.1} parent=11 // pred_check_branch
        %254 = sbr.rel (%p252) target = $region16
      $region15: #{_custom_mlp_impl.1} parent=11 // pred_region
        _
      $region16: #{_custom_mlp_impl.1} parent=11 // pred_fallthru
        _
      // Predicated region
      $region17: #{_custom_mlp_impl.1} parent=11 // pred_check
        %p255 = pneg %p85
      $region18: #{_custom_mlp_impl.1} parent=11 // pred_check_branch
        %257 = sbr.rel (%p255) target = $region20
      $region19: #{_custom_mlp_impl.1} parent=11 // pred_region
        _
      $region20: #{_custom_mlp_impl.1} parent=11 // pred_fallthru
        _
      // Predicated region
      $region21: #{_custom_mlp_impl.1} parent=11 // pred_check
        %p258 = pneg %p106
      $region22: #{_custom_mlp_impl.1} parent=11 // pred_check_branch
        %260 = sbr.rel (%p258) target = $region24
      $region23: #{_custom_mlp_impl.1} parent=11 // pred_region
        _
      $region24: #{_custom_mlp_impl.1} parent=11 // pred_fallthru
        _
      // Predicated region
      $region25: #{_custom_mlp_impl.1} parent=11 // pred_check
        %p261 = pneg %p127
      $region26: #{_custom_mlp_impl.1} parent=11 // pred_check_branch
        %263 = sbr.rel (%p261) target = $region28
      $region27: #{_custom_mlp_impl.1} parent=11 // pred_region
        _
      $region28: #{_custom_mlp_impl.1} parent=11 // pred_fallthru
        _
      // Predicated region
      $region29: #{_custom_mlp_impl.1} parent=11 // pred_check
        %p264 = pneg %p148
      $region30: #{_custom_mlp_impl.1} parent=11 // pred_check_branch
        %266 = sbr.rel (%p264) target = $region32
      $region31: #{_custom_mlp_impl.1} parent=11 // pred_region
        _
      $region32: #{_custom_mlp_impl.1} parent=11 // pred_fallthru
        _
      // Predicated region
      $region33: #{_custom_mlp_impl.1} parent=11 // pred_check
        %p267 = pneg %p169
      $region34: #{_custom_mlp_impl.1} parent=11 // pred_check_branch
        %269 = sbr.rel (%p267) target = $region36
      $region35: #{_custom_mlp_impl.1} parent=11 // pred_region
        _
      $region36: #{_custom_mlp_impl.1} parent=11 // pred_fallthru
        _
      // Predicated region
      $region37: #{_custom_mlp_impl.1} parent=11 // pred_check
        %p270 = pneg %p190
      $region38: #{_custom_mlp_impl.1} parent=11 // pred_check_branch
        %272 = sbr.rel (%p270) target = $region40
      $region39: #{_custom_mlp_impl.1} parent=11 // pred_region
        _
      $region40: #{_custom_mlp_impl.1} parent=11 // pred_fallthru
        _
      // Predicated region
      $region41: #{_custom_mlp_impl.1} parent=11 // pred_check
        %p273 = pneg %p211
      $region42: #{_custom_mlp_impl.1} parent=11 // pred_check_branch
        %275 = sbr.rel (%p273) target = $region44
      $region43: #{_custom_mlp_impl.1} parent=11 // pred_region
        _
      $region44: #{_custom_mlp_impl.1} parent=11 // pred_fallthru
        _
    $region12: #{_custom_mlp_impl.1} parent=5 // pred_fallthru
      _
    %p276 = scmp.lt.s32.totalorder %s17, 2
    // Predicated region
    $region45: #{_custom_mlp_impl.1} parent=5 // pred_check
      %p277 = pneg %p276
    $region46: #{_custom_mlp_impl.1} parent=5 // pred_check_branch
      %279 = sbr.rel (%p277) target = $region48
    $region47: #{_custom_mlp_impl.1} parent=5 // pred_region
      // Predicated region
      $region49: #{_custom_mlp_impl.1} parent=47 // pred_check
        %p280 = pneg %p37
      $region50: #{_custom_mlp_impl.1} parent=47 // pred_check_branch
        %282 = sbr.rel (%p280) target = $region52
      $region51: #{_custom_mlp_impl.1} parent=47 // pred_region
        %s283 = smul.u32 32, %s17
        %s284 = ssub.s32 38, %s283
        %p285 = scmp.lt.s32.totalorder %s284, 32
        %s286 = scalar_select %p285, %s284, 32
        %s287 = smul.u32 128, %s286
        %p288 = scmp.lt.s32.totalorder %s283, 37
        %s289 = scalar_select %p288, %s283, 37
        %s290 = smul.addr %s289, 8
        %s291 = scalar_lea.vmem %s0, %s290
        %s292 = smul.u32 32, %s17
        %s293 = ssub.s32 38, %s292
        %p294 = scmp.lt.s32.totalorder %s293, 32
        %s295 = scalar_select %p294, %s293, 32
        %s296 = smul.u32 128, %s295
      $region52: #{_custom_mlp_impl.1} parent=47 // pred_fallthru
        _
    $region48: #{_custom_mlp_impl.1} parent=5 // pred_fallthru
      _
    %p297 = scmp.le.s32.totalorder 1, %s17
    %p298 = scmp.lt.s32.totalorder %s17, 3
    %p299 = pnand %p297, %p298
    %p300 = pneg %p299
    // Predicated region
    $region53: #{_custom_mlp_impl.1} parent=5 // pred_check
      _
    $region54: #{_custom_mlp_impl.1} parent=5 // pred_check_branch
      %302 = sbr.rel (%p299) target = $region56
    $region55: #{_custom_mlp_impl.1} parent=5 // pred_region
      %s303 = ssub.s32 %s17, 1
      %s304 = smul.u32 32, %s22
      %s305 = ssub.s32 38, %s304
      %p306 = scmp.lt.s32.totalorder %s305, 32
      %s307 = scalar_select %p306, %s305, 32
      %s308 = smul.u32 128, %s307
      %p309 = scmp.lt.s32.totalorder %s304, 37
      %s310 = scalar_select %p309, %s304, 37
      %s311 = smul.addr %s310, 8
      %s312 = scalar_lea.vmem %s0, %s311
      %p313 = pneg %p43
      %p314 = pneg %p40
      %p315 = pneg %p64
      %p316 = pneg %p61
      %p317 = pneg %p85
      %p318 = pneg %p82
      %p319 = pneg %p106
      %p320 = pneg %p103
      %p321 = pneg %p127
      %p322 = pneg %p124
      %p323 = pneg %p148
      %p324 = pneg %p145
      %p325 = pneg %p169
      %p326 = pneg %p166
      %p327 = pneg %p190
      %p328 = pneg %p187
      %p329 = pneg %p211
      %p330 = pneg %p208
      %p331 = pneg %p237
      %p332 = pneg %p234
      %s333 = smul.u32 2, %s22
      %p334 = scmp.lt.s32.totalorder %s333, 3
      %s335 = scalar_select %p334, %s333, 3
      %s336 = scalar_lea.vmem %s9, %s335
      %s337 = smul.u32 32, %s22
      %s338 = ssub.s32 38, %s337
      %p339 = scmp.lt.s32.totalorder %s338, 32
      %s340 = scalar_select %p339, %s338, 32
      %s341 = smul.u32 128, %s340
      %p342 = scmp.lt.s32.totalorder %s337, 37
      %s343 = scalar_select %p342, %s337, 37
      %s344 = smul.addr %s343, 8
      %s345 = scalar_lea.vmem %s0, %s344
      %s346 = smul.u32 32, %s22
      %s347 = ssub.s32 38, %s346
      %p348 = scmp.lt.s32.totalorder %s347, 32
      %s349 = scalar_select %p348, %s347, 32
      %s350 = smul.u32 128, %s349
      %s351 = smul.u32 2, %s22
      %p352 = scmp.lt.s32.totalorder %s351, 3
      %s353 = scalar_select %p352, %s351, 3
      %s354 = scalar_lea.vmem %s9, %s353
      %s355 = smul.u32 2, %s22
      %v356 = vld [vmem:[%s1] sm:$0xff]
      %v357 = vld [vmem:[%s1 + $0x8] sm:$0xff]
      %v358 = vld [vmem:[%s1 + $0x10] sm:$0xff]
      %v359 = vld [vmem:[%s1 + $0x18] sm:$0xff]
      %v360 = vld [vmem:[%s1 + $0x20] sm:$0xff]
      %v361 = vld [vmem:[%s1 + $0x28] sm:$0xff]
      %v362 = vld [vmem:[%s1 + $0x30] sm:$0x3]
      %v363 = vld [vmem:[%s345] sm:$0xff]
      %v364 = vld [vmem:[%s345 + $0x8] sm:$0xff]
      %v365 = vld [vmem:[%s345 + $0x10] sm:$0xff]
      %v366 = vld [vmem:[%s345 + $0x18] sm:$0xff]
      %v367 = vld [vmem:[%s345 + $0x20] sm:$0xff]
      %v368 = vld [vmem:[%s345 + $0x28] sm:$0xff]
      %v369 = vld [vmem:[%s345 + $0x30] sm:$0xff]
      %v370 = vld [vmem:[%s345 + $0x38] sm:$0xff]
      %v371 = vld [vmem:[%s345 + $0x40] sm:$0xff]
      %v372 = vld [vmem:[%s345 + $0x48] sm:$0xff]
      %v373 = vld [vmem:[%s345 + $0x50] sm:$0xff]
      %v374 = vld [vmem:[%s345 + $0x58] sm:$0xff]
      %v375 = vld [vmem:[%s345 + $0x60] sm:$0xff]
      %v376 = vld [vmem:[%s345 + $0x68] sm:$0xff]
      %v377 = vld [vmem:[%s345 + $0x70] sm:$0xff]
      %v378 = vld [vmem:[%s345 + $0x78] sm:$0xff]
      %v379 = vld [vmem:[%s345 + $0x80] sm:$0xff]
      %v380 = vld [vmem:[%s345 + $0x88] sm:$0xff]
      %v381 = vld [vmem:[%s345 + $0x90] sm:$0xff]
      %v382 = vld [vmem:[%s345 + $0x98] sm:$0xff]
      %v383 = vld [vmem:[%s345 + $0xa0] sm:$0xff]
      %v384 = vld [vmem:[%s345 + $0xa8] sm:$0xff]
      %v385 = vld [vmem:[%s345 + $0xb0] sm:$0xff]
      %v386 = vld [vmem:[%s345 + $0xb8] sm:$0xff]
      %v387 = vld [vmem:[%s345 + $0xc0] sm:$0xff]
      %v388 = vld [vmem:[%s345 + $0xc8] sm:$0xff]
      %v389 = vld [vmem:[%s345 + $0xd0] sm:$0xff]
      %v390 = vld [vmem:[%s345 + $0xd8] sm:$0xff]
      %v391 = vld [vmem:[%s345 + $0xe0] sm:$0xff]
      %v392 = vld [vmem:[%s345 + $0xe8] sm:$0xff]
      %v393 = vld [vmem:[%s345 + $0xf0] sm:$0xff]
      %v394 = vld [vmem:[%s345 + $0xf8] sm:$0xff]
      %v395 = vld [vmem:[%s2] sm:$0xff]
      %v396 = vld [vmem:[%s2 + $0x8] sm:$0xff]
      %v397 = vld [vmem:[%s2 + $0x10] sm:$0xff]
      %v398 = vld [vmem:[%s2 + $0x18] sm:$0xff]
      %v399 = vld [vmem:[%s2 + $0x20] sm:$0xff]
      %v400 = vld [vmem:[%s2 + $0x28] sm:$0xff]
      %v401 = vld [vmem:[%s2 + $0x30] sm:$0x3]
      %403 = vset.pattern.permute.xlu0 0
      %404 = vperm.xlu0 %403, %v395
      %v405 = vpop.permute.xlu0 %404
      %408 = vset.pattern.permute.xlu0 0
      %409 = vperm.xlu0 %408, %v396
      %v410 = vpop.permute.xlu0 %409
      %413 = vset.pattern.permute.xlu0 0
      %414 = vperm.xlu0 %413, %v397
      %v415 = vpop.permute.xlu0 %414
      %418 = vset.pattern.permute.xlu0 0
      %419 = vperm.xlu0 %418, %v398
      %v420 = vpop.permute.xlu0 %419
      %423 = vset.pattern.permute.xlu0 0
      %424 = vperm.xlu0 %423, %v399
      %v425 = vpop.permute.xlu0 %424
      %428 = vset.pattern.permute.xlu0 0
      %429 = vperm.xlu0 %428, %v400
      %v430 = vpop.permute.xlu0 %429
      %433 = vset.pattern.permute.xlu0 0
      %434 = vperm.xlu0 %433, %v401
      %v435 = vpop.permute.xlu0 %434
      %vm437 = vcmask 351232
      %v439 = vsel %vm437, %v356, 0
      %v442 = vsel %vm437, %v357, 0
      %v445 = vsel %vm437, %v358, 0
      %v448 = vsel %vm437, %v359, 0
      %v451 = vsel %vm437, %v360, 0
      %v454 = vsel %vm437, %v361, 0
      %v457 = vsel %vm437, %v362, 0
      %v460 = vsel %vm437, %v363, 0
      %v463 = vsel %vm437, %v364, 0
      %v466 = vsel %vm437, %v365, 0
      %v469 = vsel %vm437, %v366, 0
      %v472 = vsel %vm437, %v367, 0
      %v475 = vsel %vm437, %v368, 0
      %v478 = vsel %vm437, %v369, 0
      %v481 = vsel %vm437, %v370, 0
      %v484 = vsel %vm437, %v371, 0
      %v487 = vsel %vm437, %v372, 0
      %v490 = vsel %vm437, %v373, 0
      %v493 = vsel %vm437, %v374, 0
      %v496 = vsel %vm437, %v375, 0
      %v499 = vsel %vm437, %v376, 0
      %v502 = vsel %vm437, %v377, 0
      %v505 = vsel %vm437, %v378, 0
      %v508 = vsel %vm437, %v379, 0
      %v511 = vsel %vm437, %v380, 0
      %v514 = vsel %vm437, %v381, 0
      %v517 = vsel %vm437, %v382, 0
      %v520 = vsel %vm437, %v383, 0
      %v523 = vsel %vm437, %v384, 0
      %v526 = vsel %vm437, %v385, 0
      %v529 = vsel %vm437, %v386, 0
      %v532 = vsel %vm437, %v387, 0
      %v535 = vsel %vm437, %v388, 0
      %v538 = vsel %vm437, %v389, 0
      %v541 = vsel %vm437, %v390, 0
      %v544 = vsel %vm437, %v391, 0
      %v547 = vsel %vm437, %v392, 0
      %v550 = vsel %vm437, %v393, 0
      %v553 = vsel %vm437, %v394, 0
      %555 = vmatprep.subr.mxu0 0.0
      %556 = vmatpush1.xpose.msra.mxu0 %v460
      %557 = vmatprep.subr.mxu0 0.0
      %558 = vmatpush1.xpose.msra.mxu0 %v463
      %559 = vmatprep.subr.mxu0 0.0
      %560 = vmatpush1.xpose.msra.mxu0 %v466
      %561 = vmatprep.subr.mxu0 0.0
      %562 = vmatpush1.xpose.msra.mxu0 %v469
      %563 = vmatprep.subr.mxu0 0.0
      %564 = vmatpush1.xpose.msra.mxu0 %v472
      %565 = vmatprep.subr.mxu0 0.0
      %566 = vmatpush1.xpose.msra.mxu0 %v475
      %567 = vmatprep.subr.mxu0 0.0
      %568 = vmatpush1.xpose.msra.mxu0 %v478
      %569 = vmatprep.subr.mxu0 0.0
      %570 = vmatpush1.xpose.msra.mxu0 %v481
      %571 = vmatprep.subr.mxu0 0.0
      %572 = vmatpush1.xpose.msra.mxu0 %v484
      %573 = vmatprep.subr.mxu0 0.0
      %574 = vmatpush1.xpose.msra.mxu0 %v487
      %575 = vmatprep.subr.mxu0 0.0
      %576 = vmatpush1.xpose.msra.mxu0 %v490
      %577 = vmatprep.subr.mxu0 0.0
      %578 = vmatpush1.xpose.msra.mxu0 %v493
      %579 = vmatprep.subr.mxu0 0.0
      %580 = vmatpush1.xpose.msra.mxu0 %v496
      %581 = vmatprep.subr.mxu0 0.0
      %582 = vmatpush1.xpose.msra.mxu0 %v499
      %583 = vmatprep.subr.mxu0 0.0
      %584 = vmatpush1.xpose.msra.mxu0 %v502
      %585 = vmatprep.subr.mxu0 0.0
      %586 = vmatpush1.xpose.msra.mxu0 %v505
      %587 = vmatprep.subr.mxu0 0.0
      %588 = vmatpush1.xpose.msra.mxu0 %v508
      %589 = vmatprep.subr.mxu0 0.0
      %590 = vmatpush1.xpose.msra.mxu0 %v511
      %591 = vmatprep.subr.mxu0 0.0
      %592 = vmatpush1.xpose.msra.mxu0 %v514
      %593 = vmatprep.subr.mxu0 0.0
      %594 = vmatpush1.xpose.msra.mxu0 %v517
      %595 = vmatprep.subr.mxu0 0.0
      %596 = vmatpush1.xpose.msra.mxu0 %v520
      %597 = vmatprep.subr.mxu0 0.0
      %598 = vmatpush1.xpose.msra.mxu0 %v523
      %599 = vmatprep.subr.mxu0 0.0
      %600 = vmatpush1.xpose.msra.mxu0 %v526
      %601 = vmatprep.subr.mxu0 0.0
      %602 = vmatpush1.xpose.msra.mxu0 %v529
      %603 = vmatprep.subr.mxu0 0.0
      %604 = vmatpush1.xpose.msra.mxu0 %v532
      %605 = vmatprep.subr.mxu0 0.0
      %606 = vmatpush1.xpose.msra.mxu0 %v535
      %607 = vmatprep.subr.mxu0 0.0
      %608 = vmatpush1.xpose.msra.mxu0 %v538
      %609 = vmatprep.subr.mxu0 0.0
      %610 = vmatpush1.xpose.msra.mxu0 %v541
      %611 = vmatprep.subr.mxu0 0.0
      %612 = vmatpush1.xpose.msra.mxu0 %v544
      %613 = vmatprep.subr.mxu0 0.0
      %614 = vmatpush1.xpose.msra.mxu0 %v547
      %615 = vmatprep.subr.mxu0 0.0
      %616 = vmatpush1.xpose.msra.mxu0 %v550
      %617 = vmatprep.subr.mxu0 0.0
      %618 = vmatpush1.xpose.msra.mxu0 %v553
      %619 = vmatprep.mubr.f32.mxu0 0.0
      %620 = vmatmul.mubr.f32.gmra.mrb[0].mxu0 %v439
      %v621 = vpop.f32.mrb[0].mxu0
      %v622 = vadd.f32 %v405, %v621
      %v623 = vpop.f32.mrb[0].mxu0
      %v624 = vadd.f32 %v405, %v623
      %625 = vmatprep.mubr.f32.mxu0 0.0
      %626 = vmatmul.mubr.f32.gmra.mrb[0].mxu0 %v442
      %v627 = vpop.f32.mrb[0].mxu0
      %v628 = vadd.f32 %v410, %v627
      %v629 = vpop.f32.mrb[0].mxu0
      %v630 = vadd.f32 %v410, %v629
      %631 = vmatprep.mubr.f32.mxu0 0.0
      %632 = vmatmul.mubr.f32.gmra.mrb[0].mxu0 %v445
      %v633 = vpop.f32.mrb[0].mxu0
      %v634 = vadd.f32 %v415, %v633
      %v635 = vpop.f32.mrb[0].mxu0
      %v636 = vadd.f32 %v415, %v635
      %637 = vmatprep.mubr.f32.mxu0 0.0
      %638 = vmatmul.mubr.f32.gmra.mrb[0].mxu0 %v448
      %v639 = vpop.f32.mrb[0].mxu0
      %v640 = vadd.f32 %v420, %v639
      %v641 = vpop.f32.mrb[0].mxu0
      %v642 = vadd.f32 %v420, %v641
      %643 = vmatprep.mubr.f32.mxu0 0.0
      %644 = vmatmul.mubr.f32.gmra.mrb[0].mxu0 %v451
      %v645 = vpop.f32.mrb[0].mxu0
      %v646 = vadd.f32 %v425, %v645
      %v647 = vpop.f32.mrb[0].mxu0
      %v648 = vadd.f32 %v425, %v647
      %649 = vmatprep.mubr.f32.mxu0 0.0
      %650 = vmatmul.mubr.f32.gmra.mrb[0].mxu0 %v454
      %v651 = vpop.f32.mrb[0].mxu0
      %v652 = vadd.f32 %v430, %v651
      %v653 = vpop.f32.mrb[0].mxu0
      %v654 = vadd.f32 %v430, %v653
      %655 = vmatprep.mubr.f32.mxu0 0.0
      %656 = vmatmul.mubr.f32.gmra.mrb[0].mxu0 %v457
      %v657 = vpop.f32.mrb[0].mxu0
      %v658 = vadd.f32 %v435, %v657
      %v659 = vpop.f32.mrb[0].mxu0
      %v660 = vadd.f32 %v435, %v659
      %661 = vdwg.mxu0
      %v662 = vmax.f32 %v622, 0.0
      %v663 = vmax.f32 %v624, 0.0
      %v664 = vmax.f32 %v628, 0.0
      %v665 = vmax.f32 %v630, 0.0
      %v666 = vmax.f32 %v634, 0.0
      %v667 = vmax.f32 %v636, 0.0
      %v668 = vmax.f32 %v640, 0.0
      %v669 = vmax.f32 %v642, 0.0
      %v670 = vmax.f32 %v646, 0.0
      %v671 = vmax.f32 %v648, 0.0
      %v672 = vmax.f32 %v652, 0.0
      %v673 = vmax.f32 %v654, 0.0
      %v674 = vmax.f32 %v658, 0.0
      %v675 = vmax.f32 %v660, 0.0
      %676 = vst [vmem:[#allocation2] sm:$0xff] %v662
      %677 = vst [vmem:[#allocation2 + $0x8] sm:$0xff] %v663
      %678 = vst [vmem:[#allocation2 + $0x10] sm:$0xff] %v664
      %679 = vst [vmem:[#allocation2 + $0x18] sm:$0xff] %v665
      %680 = vst [vmem:[#allocation2 + $0x20] sm:$0xff] %v666
      %681 = vst [vmem:[#allocation2 + $0x28] sm:$0xff] %v667
      %682 = vst [vmem:[#allocation2 + $0x30] sm:$0xff] %v668
      %683 = vst [vmem:[#allocation2 + $0x38] sm:$0xff] %v669
      %684 = vst [vmem:[#allocation2 + $0x40] sm:$0xff] %v670
      %685 = vst [vmem:[#allocation2 + $0x48] sm:$0xff] %v671
      %686 = vst [vmem:[#allocation2 + $0x50] sm:$0xff] %v672
      %687 = vst [vmem:[#allocation2 + $0x58] sm:$0xff] %v673
      %688 = vst [vmem:[#allocation2 + $0x60] sm:$0x3] %v674
      %689 = vst [vmem:[#allocation2 + $0x68] sm:$0x3] %v675
      %v690 = vld [vmem:[%s3] sm:$0xff]
      %v691 = vld [vmem:[%s3 + $0x8] sm:$0xff]
      %v692 = vld [vmem:[%s3 + $0x10] sm:$0xff]
      %v693 = vld [vmem:[%s3 + $0x18] sm:$0xff]
      %v694 = vld [vmem:[%s3 + $0x20] sm:$0xff]
      %v695 = vld [vmem:[%s3 + $0x28] sm:$0xff]
      %v696 = vld [vmem:[%s3 + $0x30] sm:$0x3]
      %v697 = vld [vmem:[#allocation2] sm:$0xff]
      %v698 = vld [vmem:[#allocation2 + $0x8] sm:$0xff]
      %v699 = vld [vmem:[#allocation2 + $0x10] sm:$0xff]
      %v700 = vld [vmem:[#allocation2 + $0x18] sm:$0xff]
      %v701 = vld [vmem:[#allocation2 + $0x20] sm:$0xff]
      %v702 = vld [vmem:[#allocation2 + $0x28] sm:$0xff]
      %v703 = vld [vmem:[#allocation2 + $0x30] sm:$0xff]
      %v704 = vld [vmem:[#allocation2 + $0x38] sm:$0xff]
      %v705 = vld [vmem:[#allocation2 + $0x40] sm:$0xff]
      %v706 = vld [vmem:[#allocation2 + $0x48] sm:$0xff]
      %v707 = vld [vmem:[#allocation2 + $0x50] sm:$0xff]
      %v708 = vld [vmem:[#allocation2 + $0x58] sm:$0xff]
      %v709 = vld [vmem:[#allocation2 + $0x60] sm:$0x3]
      %v710 = vld [vmem:[#allocation2 + $0x68] sm:$0x3]
      %v711 = vld [vmem:[%s4] sm:$0xff]
      %v712 = vld [vmem:[%s4 + $0x8] sm:$0xff]
      %v713 = vld [vmem:[%s4 + $0x10] sm:$0xff]
      %v714 = vld [vmem:[%s4 + $0x18] sm:$0xff]
      %v715 = vld [vmem:[%s4 + $0x20] sm:$0xff]
      %v716 = vld [vmem:[%s4 + $0x28] sm:$0xff]
      %v717 = vld [vmem:[%s4 + $0x30] sm:$0x3]
      %719 = vset.pattern.permute.xlu0 0
      %720 = vperm.xlu0 %719, %v711
      %v721 = vpop.permute.xlu0 %720
      %724 = vset.pattern.permute.xlu0 0
      %725 = vperm.xlu0 %724, %v712
      %v726 = vpop.permute.xlu0 %725
      %729 = vset.pattern.permute.xlu0 0
      %730 = vperm.xlu0 %729, %v713
      %v731 = vpop.permute.xlu0 %730
      %734 = vset.pattern.permute.xlu0 0
      %735 = vperm.xlu0 %734, %v714
      %v736 = vpop.permute.xlu0 %735
      %739 = vset.pattern.permute.xlu0 0
      %740 = vperm.xlu0 %739, %v715
      %v741 = vpop.permute.xlu0 %740
      %744 = vset.pattern.permute.xlu0 0
      %745 = vperm.xlu0 %744, %v716
      %v746 = vpop.permute.xlu0 %745
      %749 = vset.pattern.permute.xlu0 0
      %750 = vperm.xlu0 %749, %v717
      %v751 = vpop.permute.xlu0 %750
      %vm753 = vcmask 408576
      %v755 = vsel %vm753, %v690, 0
      %v758 = vsel %vm753, %v691, 0
      %v761 = vsel %vm753, %v692, 0
      %v764 = vsel %vm753, %v693, 0
      %v767 = vsel %vm753, %v694, 0
      %v770 = vsel %vm753, %v695, 0
      %v773 = vsel %vm753, %v696, 0
      %vm775 = vcmask 1041408
      %v777 = vsel %vm775, %v709, 0
      %v780 = vsel %vm775, %v710, 0
      %782 = vmatprep.subr.mxu0 %v698
      %783 = vmatpush1.msra.mxu0 %v697
      %784 = vmatprep.subr.mxu0 %v700
      %785 = vmatpush1.msra.mxu0 %v699
      %786 = vmatprep.subr.mxu0 %v702
      %787 = vmatpush1.msra.mxu0 %v701
      %788 = vmatprep.subr.mxu0 %v704
      %789 = vmatpush1.msra.mxu0 %v703
      %790 = vmatprep.subr.mxu0 %v706
      %791 = vmatpush1.msra.mxu0 %v705
      %792 = vmatprep.subr.mxu0 %v708
      %793 = vmatpush1.msra.mxu0 %v707
      %794 = vmatprep.subr.mxu0 %v780
      %795 = vmatpush1.msra.mxu0 %v777
      %796 = vmatprep.subr.mxu0 0.0
      %797 = vmatpush1.msra.mxu0 0.0
      %798 = vmatprep.subr.mxu0 0.0
      %799 = vmatpush1.msra.mxu0 0.0
      %800 = vmatprep.subr.mxu0 0.0
      %801 = vmatpush1.msra.mxu0 0.0
      %802 = vmatprep.subr.mxu0 0.0
      %803 = vmatpush1.msra.mxu0 0.0
      %804 = vmatprep.subr.mxu0 0.0
      %805 = vmatpush1.msra.mxu0 0.0
      %806 = vmatprep.subr.mxu0 0.0
      %807 = vmatpush1.msra.mxu0 0.0
      %808 = vmatprep.subr.mxu0 0.0
      %809 = vmatpush1.msra.mxu0 0.0
      %810 = vmatprep.subr.mxu0 0.0
      %811 = vmatpush1.msra.mxu0 0.0
      %812 = vmatprep.subr.mxu0 0.0
      %813 = vmatpush1.msra.mxu0 0.0
      %814 = vmatprep.subr.mxu0 0.0
      %815 = vmatpush1.msra.mxu0 0.0
      %816 = vmatprep.subr.mxu0 0.0
      %817 = vmatpush1.msra.mxu0 0.0
      %818 = vmatprep.subr.mxu0 0.0
      %819 = vmatpush1.msra.mxu0 0.0
      %820 = vmatprep.subr.mxu0 0.0
      %821 = vmatpush1.msra.mxu0 0.0
      %822 = vmatprep.subr.mxu0 0.0
      %823 = vmatpush1.msra.mxu0 0.0
      %824 = vmatprep.subr.mxu0 0.0
      %825 = vmatpush1.msra.mxu0 0.0
      %826 = vmatprep.subr.mxu0 0.0
      %827 = vmatpush1.msra.mxu0 0.0
      %828 = vmatprep.subr.mxu0 0.0
      %829 = vmatpush1.msra.mxu0 0.0
      %830 = vmatprep.subr.mxu0 0.0
      %831 = vmatpush1.msra.mxu0 0.0
      %832 = vmatprep.subr.mxu0 0.0
      %833 = vmatpush1.msra.mxu0 0.0
      %834 = vmatprep.subr.mxu0 0.0
      %835 = vmatpush1.msra.mxu0 0.0
      %836 = vmatprep.subr.mxu0 0.0
      %837 = vmatpush1.msra.mxu0 0.0
      %838 = vmatprep.subr.mxu0 0.0
      %839 = vmatpush1.msra.mxu0 0.0
      %840 = vmatprep.subr.mxu0 0.0
      %841 = vmatpush1.msra.mxu0 0.0
      %842 = vmatprep.subr.mxu0 0.0
      %843 = vmatpush1.msra.mxu0 0.0
      %844 = vmatprep.subr.mxu0 0.0
      %845 = vmatpush1.msra.mxu0 0.0
      %846 = vmatprep.mubr.f32.mxu0 0.0
      %847 = vmatmul.mubr.f32.gmra.mrb[0].mxu0 %v755
      %v848 = vpop.f32.mrb[0].mxu0
      %v849 = vadd.f32 %v721, %v848
      %v850 = vpop.f32.mrb[0].mxu0
      %v851 = vadd.f32 %v721, %v850
      %852 = vmatprep.mubr.f32.mxu0 0.0
      %853 = vmatmul.mubr.f32.gmra.mrb[0].mxu0 %v758
      %v854 = vpop.f32.mrb[0].mxu0
      %v855 = vadd.f32 %v726, %v854
      %v856 = vpop.f32.mrb[0].mxu0
      %v857 = vadd.f32 %v726, %v856
      %858 = vmatprep.mubr.f32.mxu0 0.0
      %859 = vmatmul.mubr.f32.gmra.mrb[0].mxu0 %v761
      %v860 = vpop.f32.mrb[0].mxu0
      %v861 = vadd.f32 %v731, %v860
      %v862 = vpop.f32.mrb[0].mxu0
      %v863 = vadd.f32 %v731, %v862
      %864 = vmatprep.mubr.f32.mxu0 0.0
      %865 = vmatmul.mubr.f32.gmra.mrb[0].mxu0 %v764
      %v866 = vpop.f32.mrb[0].mxu0
      %v867 = vadd.f32 %v736, %v866
      %v868 = vpop.f32.mrb[0].mxu0
      %v869 = vadd.f32 %v736, %v868
      %870 = vmatprep.mubr.f32.mxu0 0.0
      %871 = vmatmul.mubr.f32.gmra.mrb[0].mxu0 %v767
      %v872 = vpop.f32.mrb[0].mxu0
      %v873 = vadd.f32 %v741, %v872
      %v874 = vpop.f32.mrb[0].mxu0
      %v875 = vadd.f32 %v741, %v874
      %876 = vmatprep.mubr.f32.mxu0 0.0
      %877 = vmatmul.mubr.f32.gmra.mrb[0].mxu0 %v770
      %v878 = vpop.f32.mrb[0].mxu0
      %v879 = vadd.f32 %v746, %v878
      %v880 = vpop.f32.mrb[0].mxu0
      %v881 = vadd.f32 %v746, %v880
      %882 = vmatprep.mubr.f32.mxu0 0.0
      %883 = vmatmul.mubr.f32.gmra.mrb[0].mxu0 %v773
      %v884 = vpop.f32.mrb[0].mxu0
      %v885 = vadd.f32 %v751, %v884
      %v886 = vpop.f32.mrb[0].mxu0
      %v887 = vadd.f32 %v751, %v886
      %888 = vdwg.mxu0
      %v889 = vmax.f32 %v849, 0.0
      %v890 = vmax.f32 %v851, 0.0
      %v891 = vmax.f32 %v855, 0.0
      %v892 = vmax.f32 %v857, 0.0
      %v893 = vmax.f32 %v861, 0.0
      %v894 = vmax.f32 %v863, 0.0
      %v895 = vmax.f32 %v867, 0.0
      %v896 = vmax.f32 %v869, 0.0
      %v897 = vmax.f32 %v873, 0.0
      %v898 = vmax.f32 %v875, 0.0
      %v899 = vmax.f32 %v879, 0.0
      %v900 = vmax.f32 %v881, 0.0
      %v901 = vmax.f32 %v885, 0.0
      %v902 = vmax.f32 %v887, 0.0
      %903 = vst [vmem:[#allocation3] sm:$0xff] %v889
      %904 = vst [vmem:[#allocation3 + $0x8] sm:$0xff] %v890
      %905 = vst [vmem:[#allocation3 + $0x10] sm:$0xff] %v891
      %906 = vst [vmem:[#allocation3 + $0x18] sm:$0xff] %v892
      %907 = vst [vmem:[#allocation3 + $0x20] sm:$0xff] %v893
      %908 = vst [vmem:[#allocation3 + $0x28] sm:$0xff] %v894
      %909 = vst [vmem:[#allocation3 + $0x30] sm:$0xff] %v895
      %910 = vst [vmem:[#allocation3 + $0x38] sm:$0xff] %v896
      %911 = vst [vmem:[#allocation3 + $0x40] sm:$0xff] %v897
      %912 = vst [vmem:[#allocation3 + $0x48] sm:$0xff] %v898
      %913 = vst [vmem:[#allocation3 + $0x50] sm:$0xff] %v899
      %914 = vst [vmem:[#allocation3 + $0x58] sm:$0xff] %v900
      %915 = vst [vmem:[#allocation3 + $0x60] sm:$0x3] %v901
      %916 = vst [vmem:[#allocation3 + $0x68] sm:$0x3] %v902
      %v917 = vld [vmem:[%s5] sm:$0xff]
      %v918 = vld [vmem:[%s5 + $0x8] sm:$0xff]
      %v919 = vld [vmem:[%s5 + $0x10] sm:$0xff]
      %v920 = vld [vmem:[%s5 + $0x18] sm:$0xff]
      %v921 = vld [vmem:[%s5 + $0x20] sm:$0xff]
      %v922 = vld [vmem:[%s5 + $0x28] sm:$0xff]
      %v923 = vld [vmem:[%s5 + $0x30] sm:$0x3]
      %v924 = vld [vmem:[#allocation3] sm:$0xff]
      %v925 = vld [vmem:[#allocation3 + $0x8] sm:$0xff]
      %v926 = vld [vmem:[#allocation3 + $0x10] sm:$0xff]
      %v927 = vld [vmem:[#allocation3 + $0x18] sm:$0xff]
      %v928 = vld [vmem:[#allocation3 + $0x20] sm:$0xff]
      %v929 = vld [vmem:[#allocation3 + $0x28] sm:$0xff]
      %v930 = vld [vmem:[#allocation3 + $0x30] sm:$0xff]
      %v931 = vld [vmem:[#allocation3 + $0x38] sm:$0xff]
      %v932 = vld [vmem:[#allocation3 + $0x40] sm:$0xff]
      %v933 = vld [vmem:[#allocation3 + $0x48] sm:$0xff]
      %v934 = vld [vmem:[#allocation3 + $0x50] sm:$0xff]
      %v935 = vld [vmem:[#allocation3 + $0x58] sm:$0xff]
      %v936 = vld [vmem:[#allocation3 + $0x60] sm:$0x3]
      %v937 = vld [vmem:[#allocation3 + $0x68] sm:$0x3]
      %v938 = vld [vmem:[%s6] sm:$0xff]
      %v939 = vld [vmem:[%s6 + $0x8] sm:$0xff]
      %v940 = vld [vmem:[%s6 + $0x10] sm:$0xff]
      %v941 = vld [vmem:[%s6 + $0x18] sm:$0xff]
      %v942 = vld [vmem:[%s6 + $0x20] sm:$0xff]
      %v943 = vld [vmem:[%s6 + $0x28] sm:$0xff]
      %v944 = vld [vmem:[%s6 + $0x30] sm:$0x3]
      %946 = vset.pattern.permute.xlu0 0
      %947 = vperm.xlu0 %946, %v938
      %v948 = vpop.permute.xlu0 %947
      %951 = vset.pattern.permute.xlu0 0
      %952 = vperm.xlu0 %951, %v939
      %v953 = vpop.permute.xlu0 %952
      %956 = vset.pattern.permute.xlu0 0
      %957 = vperm.xlu0 %956, %v940
      %v958 = vpop.permute.xlu0 %957
      %961 = vset.pattern.permute.xlu0 0
      %962 = vperm.xlu0 %961, %v941
      %v963 = vpop.permute.xlu0 %962
      %966 = vset.pattern.permute.xlu0 0
      %967 = vperm.xlu0 %966, %v942
      %v968 = vpop.permute.xlu0 %967
      %971 = vset.pattern.permute.xlu0 0
      %972 = vperm.xlu0 %971, %v943
      %v973 = vpop.permute.xlu0 %972
      %976 = vset.pattern.permute.xlu0 0
      %977 = vperm.xlu0 %976, %v944
      %v978 = vpop.permute.xlu0 %977
      %v981 = vsel %vm753, %v917, 0
      %v984 = vsel %vm753, %v918, 0
      %v987 = vsel %vm753, %v919, 0
      %v990 = vsel %vm753, %v920, 0
      %v993 = vsel %vm753, %v921, 0
      %v996 = vsel %vm753, %v922, 0
      %v999 = vsel %vm753, %v923, 0
      %v1002 = vsel %vm775, %v936, 0
      %v1005 = vsel %vm775, %v937, 0
      %1007 = vmatprep.subr.mxu0 %v925
      %1008 = vmatpush1.msra.mxu0 %v924
      %1009 = vmatprep.subr.mxu0 %v927
      %1010 = vmatpush1.msra.mxu0 %v926
      %1011 = vmatprep.subr.mxu0 %v929
      %1012 = vmatpush1.msra.mxu0 %v928
      %1013 = vmatprep.subr.mxu0 %v931
      %1014 = vmatpush1.msra.mxu0 %v930
      %1015 = vmatprep.subr.mxu0 %v933
      %1016 = vmatpush1.msra.mxu0 %v932
      %1017 = vmatprep.subr.mxu0 %v935
      %1018 = vmatpush1.msra.mxu0 %v934
      %1019 = vmatprep.subr.mxu0 %v1005
      %1020 = vmatpush1.msra.mxu0 %v1002
      %1021 = vmatprep.subr.mxu0 0.0
      %1022 = vmatpush1.msra.mxu0 0.0
      %1023 = vmatprep.subr.mxu0 0.0
      %1024 = vmatpush1.msra.mxu0 0.0
      %1025 = vmatprep.subr.mxu0 0.0
      %1026 = vmatpush1.msra.mxu0 0.0
      %1027 = vmatprep.subr.mxu0 0.0
      %1028 = vmatpush1.msra.mxu0 0.0
      %1029 = vmatprep.subr.mxu0 0.0
      %1030 = vmatpush1.msra.mxu0 0.0
      %1031 = vmatprep.subr.mxu0 0.0
      %1032 = vmatpush1.msra.mxu0 0.0
      %1033 = vmatprep.subr.mxu0 0.0
      %1034 = vmatpush1.msra.mxu0 0.0
      %1035 = vmatprep.subr.mxu0 0.0
      %1036 = vmatpush1.msra.mxu0 0.0
      %1037 = vmatprep.subr.mxu0 0.0
      %1038 = vmatpush1.msra.mxu0 0.0
      %1039 = vmatprep.subr.mxu0 0.0
      %1040 = vmatpush1.msra.mxu0 0.0
      %1041 = vmatprep.subr.mxu0 0.0
      %1042 = vmatpush1.msra.mxu0 0.0
      %1043 = vmatprep.subr.mxu0 0.0
      %1044 = vmatpush1.msra.mxu0 0.0
      %1045 = vmatprep.subr.mxu0 0.0
      %1046 = vmatpush1.msra.mxu0 0.0
      %1047 = vmatprep.subr.mxu0 0.0
      %1048 = vmatpush1.msra.mxu0 0.0
      %1049 = vmatprep.subr.mxu0 0.0
      %1050 = vmatpush1.msra.mxu0 0.0
      %1051 = vmatprep.subr.mxu0 0.0
      %1052 = vmatpush1.msra.mxu0 0.0
      %1053 = vmatprep.subr.mxu0 0.0
      %1054 = vmatpush1.msra.mxu0 0.0
      %1055 = vmatprep.subr.mxu0 0.0
      %1056 = vmatpush1.msra.mxu0 0.0
      %1057 = vmatprep.subr.mxu0 0.0
      %1058 = vmatpush1.msra.mxu0 0.0
      %1059 = vmatprep.subr.mxu0 0.0
      %1060 = vmatpush1.msra.mxu0 0.0
      %1061 = vmatprep.subr.mxu0 0.0
      %1062 = vmatpush1.msra.mxu0 0.0
      %1063 = vmatprep.subr.mxu0 0.0
      %1064 = vmatpush1.msra.mxu0 0.0
      %1065 = vmatprep.subr.mxu0 0.0
      %1066 = vmatpush1.msra.mxu0 0.0
      %1067 = vmatprep.subr.mxu0 0.0
      %1068 = vmatpush1.msra.mxu0 0.0
      %1069 = vmatprep.subr.mxu0 0.0
      %1070 = vmatpush1.msra.mxu0 0.0
      %1071 = vmatprep.mubr.f32.mxu0 0.0
      %1072 = vmatmul.mubr.f32.gmra.mrb[0].mxu0 %v981
      %v1073 = vpop.f32.mrb[0].mxu0
      %v1074 = vadd.f32 %v948, %v1073
      %v1075 = vpop.f32.mrb[0].mxu0
      %v1076 = vadd.f32 %v948, %v1075
      %1077 = vmatprep.mubr.f32.mxu0 0.0
      %1078 = vmatmul.mubr.f32.gmra.mrb[0].mxu0 %v984
      %v1079 = vpop.f32.mrb[0].mxu0
      %v1080 = vadd.f32 %v953, %v1079
      %v1081 = vpop.f32.mrb[0].mxu0
      %v1082 = vadd.f32 %v953, %v1081
      %1083 = vmatprep.mubr.f32.mxu0 0.0
      %1084 = vmatmul.mubr.f32.gmra.mrb[0].mxu0 %v987
      %v1085 = vpop.f32.mrb[0].mxu0
      %v1086 = vadd.f32 %v958, %v1085
      %v1087 = vpop.f32.mrb[0].mxu0
      %v1088 = vadd.f32 %v958, %v1087
      %1089 = vmatprep.mubr.f32.mxu0 0.0
      %1090 = vmatmul.mubr.f32.gmra.mrb[0].mxu0 %v990
      %v1091 = vpop.f32.mrb[0].mxu0
      %v1092 = vadd.f32 %v963, %v1091
      %v1093 = vpop.f32.mrb[0].mxu0
      %v1094 = vadd.f32 %v963, %v1093
      %1095 = vmatprep.mubr.f32.mxu0 0.0
      %1096 = vmatmul.mubr.f32.gmra.mrb[0].mxu0 %v993
      %v1097 = vpop.f32.mrb[0].mxu0
      %v1098 = vadd.f32 %v968, %v1097
      %v1099 = vpop.f32.mrb[0].mxu0
      %v1100 = vadd.f32 %v968, %v1099
      %1101 = vmatprep.mubr.f32.mxu0 0.0
      %1102 = vmatmul.mubr.f32.gmra.mrb[0].mxu0 %v996
      %v1103 = vpop.f32.mrb[0].mxu0
      %v1104 = vadd.f32 %v973, %v1103
      %v1105 = vpop.f32.mrb[0].mxu0
      %v1106 = vadd.f32 %v973, %v1105
      %1107 = vmatprep.mubr.f32.mxu0 0.0
      %1108 = vmatmul.mubr.f32.gmra.mrb[0].mxu0 %v999
      %v1109 = vpop.f32.mrb[0].mxu0
      %v1110 = vadd.f32 %v978, %v1109
      %v1111 = vpop.f32.mrb[0].mxu0
      %v1112 = vadd.f32 %v978, %v1111
      %1113 = vdwg.mxu0
      %v1114 = vmax.f32 %v1074, 0.0
      %v1115 = vmax.f32 %v1076, 0.0
      %v1116 = vmax.f32 %v1080, 0.0
      %v1117 = vmax.f32 %v1082, 0.0
      %v1118 = vmax.f32 %v1086, 0.0
      %v1119 = vmax.f32 %v1088, 0.0
      %v1120 = vmax.f32 %v1092, 0.0
      %v1121 = vmax.f32 %v1094, 0.0
      %v1122 = vmax.f32 %v1098, 0.0
      %v1123 = vmax.f32 %v1100, 0.0
      %v1124 = vmax.f32 %v1104, 0.0
      %v1125 = vmax.f32 %v1106, 0.0
      %v1126 = vmax.f32 %v1110, 0.0
      %v1127 = vmax.f32 %v1112, 0.0
      %1128 = vst [vmem:[#allocation2] sm:$0xff] %v1114
      %1129 = vst [vmem:[#allocation2 + $0x8] sm:$0xff] %v1115
      %1130 = vst [vmem:[#allocation2 + $0x10] sm:$0xff] %v1116
      %1131 = vst [vmem:[#allocation2 + $0x18] sm:$0xff] %v1117
      %1132 = vst [vmem:[#allocation2 + $0x20] sm:$0xff] %v1118
      %1133 = vst [vmem:[#allocation2 + $0x28] sm:$0xff] %v1119
      %1134 = vst [vmem:[#allocation2 + $0x30] sm:$0xff] %v1120
      %1135 = vst [vmem:[#allocation2 + $0x38] sm:$0xff] %v1121
      %1136 = vst [vmem:[#allocation2 + $0x40] sm:$0xff] %v1122
      %1137 = vst [vmem:[#allocation2 + $0x48] sm:$0xff] %v1123
      %1138 = vst [vmem:[#allocation2 + $0x50] sm:$0xff] %v1124
      %1139 = vst [vmem:[#allocation2 + $0x58] sm:$0xff] %v1125
      %1140 = vst [vmem:[#allocation2 + $0x60] sm:$0x3] %v1126
      %1141 = vst [vmem:[#allocation2 + $0x68] sm:$0x3] %v1127
      %v1142 = vld [vmem:[%s7] sm:$0x1]
      %v1143 = vld [vmem:[#allocation2] sm:$0xff]
      %v1144 = vld [vmem:[#allocation2 + $0x8] sm:$0xff]
      %v1145 = vld [vmem:[#allocation2 + $0x10] sm:$0xff]
      %v1146 = vld [vmem:[#allocation2 + $0x18] sm:$0xff]
      %v1147 = vld [vmem:[#allocation2 + $0x20] sm:$0xff]
      %v1148 = vld [vmem:[#allocation2 + $0x28] sm:$0xff]
      %v1149 = vld [vmem:[#allocation2 + $0x30] sm:$0xff]
      %v1150 = vld [vmem:[#allocation2 + $0x38] sm:$0xff]
      %v1151 = vld [vmem:[#allocation2 + $0x40] sm:$0xff]
      %v1152 = vld [vmem:[#allocation2 + $0x48] sm:$0xff]
      %v1153 = vld [vmem:[#allocation2 + $0x50] sm:$0xff]
      %v1154 = vld [vmem:[#allocation2 + $0x58] sm:$0xff]
      %v1155 = vld [vmem:[#allocation2 + $0x60] sm:$0x3]
      %v1156 = vld [vmem:[#allocation2 + $0x68] sm:$0x3]
      %v1157 = vld [vmem:[#allocation4] sm:$0x1]
      %1159 = vset.pattern.permute.xlu0 0
      %1160 = vperm.xlu0 %1159, %v1157
      %v1161 = vpop.permute.xlu0 %1160
      %v1163 = vlaneseq
      %v1164 = vshrl.u32 %v1163, 7
      %v1165 = vsub.s32 0, %v1164
      %v1166 = vrot.slane %v1161, %v1165
      %v1168 = vsel %vm753, %v1142, 0
      %v1171 = vsel %vm775, %v1155, 0
      %v1174 = vsel %vm775, %v1156, 0
      %1176 = vmatprep.subr.mxu0 %v1144
      %1177 = vmatpush1.msra.mxu0 %v1143
      %1178 = vmatprep.subr.mxu0 %v1146
      %1179 = vmatpush1.msra.mxu0 %v1145
      %1180 = vmatprep.subr.mxu0 %v1148
      %1181 = vmatpush1.msra.mxu0 %v1147
      %1182 = vmatprep.subr.mxu0 %v1150
      %1183 = vmatpush1.msra.mxu0 %v1149
      %1184 = vmatprep.subr.mxu0 %v1152
      %1185 = vmatpush1.msra.mxu0 %v1151
      %1186 = vmatprep.subr.mxu0 %v1154
      %1187 = vmatpush1.msra.mxu0 %v1153
      %1188 = vmatprep.subr.mxu0 %v1174
      %1189 = vmatpush1.msra.mxu0 %v1171
      %1190 = vmatprep.subr.mxu0 0.0
      %1191 = vmatpush1.msra.mxu0 0.0
      %1192 = vmatprep.subr.mxu0 0.0
      %1193 = vmatpush1.msra.mxu0 0.0
      %1194 = vmatprep.subr.mxu0 0.0
      %1195 = vmatpush1.msra.mxu0 0.0
      %1196 = vmatprep.subr.mxu0 0.0
      %1197 = vmatpush1.msra.mxu0 0.0
      %1198 = vmatprep.subr.mxu0 0.0
      %1199 = vmatpush1.msra.mxu0 0.0
      %1200 = vmatprep.subr.mxu0 0.0
      %1201 = vmatpush1.msra.mxu0 0.0
      %1202 = vmatprep.subr.mxu0 0.0
      %1203 = vmatpush1.msra.mxu0 0.0
      %1204 = vmatprep.subr.mxu0 0.0
      %1205 = vmatpush1.msra.mxu0 0.0
      %1206 = vmatprep.subr.mxu0 0.0
      %1207 = vmatpush1.msra.mxu0 0.0
      %1208 = vmatprep.subr.mxu0 0.0
      %1209 = vmatpush1.msra.mxu0 0.0
      %1210 = vmatprep.subr.mxu0 0.0
      %1211 = vmatpush1.msra.mxu0 0.0
      %1212 = vmatprep.subr.mxu0 0.0
      %1213 = vmatpush1.msra.mxu0 0.0
      %1214 = vmatprep.subr.mxu0 0.0
      %1215 = vmatpush1.msra.mxu0 0.0
      %1216 = vmatprep.subr.mxu0 0.0
      %1217 = vmatpush1.msra.mxu0 0.0
      %1218 = vmatprep.subr.mxu0 0.0
      %1219 = vmatpush1.msra.mxu0 0.0
      %1220 = vmatprep.subr.mxu0 0.0
      %1221 = vmatpush1.msra.mxu0 0.0
      %1222 = vmatprep.subr.mxu0 0.0
      %1223 = vmatpush1.msra.mxu0 0.0
      %1224 = vmatprep.subr.mxu0 0.0
      %1225 = vmatpush1.msra.mxu0 0.0
      %1226 = vmatprep.subr.mxu0 0.0
      %1227 = vmatpush1.msra.mxu0 0.0
      %1228 = vmatprep.subr.mxu0 0.0
      %1229 = vmatpush1.msra.mxu0 0.0
      %1230 = vmatprep.subr.mxu0 0.0
      %1231 = vmatpush1.msra.mxu0 0.0
      %1232 = vmatprep.subr.mxu0 0.0
      %1233 = vmatpush1.msra.mxu0 0.0
      %1234 = vmatprep.subr.mxu0 0.0
      %1235 = vmatpush1.msra.mxu0 0.0
      %1236 = vmatprep.subr.mxu0 0.0
      %1237 = vmatpush1.msra.mxu0 0.0
      %1238 = vmatprep.subr.mxu0 0.0
      %1239 = vmatpush1.msra.mxu0 0.0
      %1240 = vmatprep.mubr.f32.mxu0 0.0
      %1241 = vmatmul.mubr.f32.gmra.mrb[0].mxu0 %v1168
      %v1242 = vpop.f32.mrb[0].mxu0
      %v1243 = vadd.f32 %v1166, %v1242
      %v1244 = vpop.f32.mrb[0].mxu0
      %v1245 = vadd.f32 %v1166, %v1244
      %1246 = vdwg.mxu0
      %v1249 = vcombine.low %v1243, %v1245
      %v1251 = vunpack.c.l.s4 1966171168
      %v1252 = vunpack.c.0.s8 %v1251
      %v1253 = vlaneseq
      %v1254 = vshrl.u32 %v1253, 7
      %v1255 = vsub.s32 %v1252, %v1254
      %v1256 = vrot.slane %v1249, %v1255
      %v1258 = vunpack.c.l.s4 1966171168
      %v1259 = vunpack.c.0.s8 %v1258
      %v1260 = vlaneseq
      %v1261 = vshrl.u32 %v1260, 7
      %v1262 = vsub.s32 %v1259, %v1261
      %v1263 = vrot.slane %v1256, %v1262
      %v1265 = vlaneseq
      %vm1266 = vcmp.ge.s32.totalorder %v1265, 0
      %vm1267 = vcmp.lt.s32.totalorder %v1265, 256
      %vm1268 = vmand %vm1266, %vm1267
      %1269 = vst.msk [vmem:[%s354] sm:$0x3] %vm1268, %v1263
      %s1270 = smul.u32 2, %s22
      %p1271 = scmp.lt.s32.totalorder %s1270, 3
      %s1272 = scalar_select %p1271, %s1270, 3
      %s1273 = scalar_lea.vmem %s9, %s1272
      // Predicated region
      $region57: #{_custom_mlp_impl.1} parent=55 // pred_check
        %p1274 = pneg %p234
      $region58: #{_custom_mlp_impl.1} parent=55 // pred_check_branch
        %1276 = sbr.rel (%p1274) target = $region60
      $region59: #{_custom_mlp_impl.1} parent=55 // pred_region
        %s1277 = smul.u32 2, %s22
      $region60: #{_custom_mlp_impl.1} parent=55 // pred_fallthru
        _
    $region56: #{_custom_mlp_impl.1} parent=5 // pred_fallthru
      _
    %p1278 = scmp.le.s32.totalorder 2, %s17
    // Predicated region
    $region61: #{_custom_mlp_impl.1} parent=5 // pred_check
      %p1279 = pneg %p1278
    $region62: #{_custom_mlp_impl.1} parent=5 // pred_check_branch
      %1281 = sbr.rel (%p1279) target = $region64
    $region63: #{_custom_mlp_impl.1} parent=5 // pred_region
      %s1282 = ssub.s32 %s17, 2
      // Predicated region
      $region65: #{_custom_mlp_impl.1} parent=63 // pred_check
        %p1283 = pneg %p240
      $region66: #{_custom_mlp_impl.1} parent=63 // pred_check_branch
        %1285 = sbr.rel (%p1283) target = $region68
      $region67: #{_custom_mlp_impl.1} parent=63 // pred_region
        %s1286 = smul.u32 2, %s23
        %p1287 = scmp.lt.s32.totalorder %s1286, 3
        %s1288 = scalar_select %p1287, %s1286, 3
        %s1289 = scalar_lea.vmem %s9, %s1288
      $region68: #{_custom_mlp_impl.1} parent=63 // pred_fallthru
        _
    $region64: #{_custom_mlp_impl.1} parent=5 // pred_fallthru
      _
  $region6: #{_custom_mlp_impl.1} parent=0 // loop_footer
    %s21 = sadd.s32 1, %s17
  $region7: #{_custom_mlp_impl.1} parent=0 // loop_footer_branch
    %16 = sbr.rel target = $region3
  $region8: #{_custom_mlp_impl.1} parent=0 // loop_exit
    _

</llo_original>
